<compile_context>
chip_gen: v6e
topology: v6e:2x2x1
jax: 0.10.0
libtpu: 0.0.40
codegen_flags: <defaults>
</compile_context>

<pallas_src>
import functools

import numpy as np
import jax
import jax.numpy as jnp
from jax.experimental import pallas as pl
from jax.experimental.pallas import tpu as pltpu


def _multi_step_loss_kernel(state_ref, actions_ref, targets_ref,
                            w1s_ref, w1a_ref, b1_ref, w2_ref, b2_ref,
                            out_ref, *, num_steps, action_dim, state_dim,
                            discounts, inv_n):
    """One batch tile: roll the dynamics model T steps and write this tile's
    (already discounted and MSE-normalized) partial loss, broadcast across a
    lane-dense (8, 128) output block."""
    # Model parameters (small, VMEM-resident, identical across grid steps).
    w1s = w1s_ref[...].astype(jnp.float32)
    w1a = w1a_ref[...].astype(jnp.float32)
    b1 = b1_ref[...].astype(jnp.float32)
    w2 = w2_ref[...].astype(jnp.float32)
    b2 = b2_ref[...].astype(jnp.float32)

    out = state_ref[...].astype(jnp.float32)            # (tb, S)

    # Hoist the action projections off the serially-dependent rollout chain:
    # these T matmuls have no inter-step dependencies so they pipeline
    # back-to-back on the MXU before the dependent loop starts.
    a_proj = []
    for i in range(num_steps):                           # static unroll, T small
        a_i = actions_ref[:, i * action_dim:(i + 1) * action_dim]
        a_proj.append(
            jnp.dot(a_i.astype(jnp.float32), w1a,
                    preferred_element_type=jnp.float32) + b1)

    # Vector accumulator: defer the cross-lane reduction to after the loop.
    sq_acc = jnp.zeros(out.shape, jnp.float32)           # (tb, S)
    for i in range(num_steps):
        h = jnp.maximum(
            jnp.dot(out, w1s, preferred_element_type=jnp.float32) + a_proj[i],
            0.0)
        out = out + jnp.dot(h, w2, preferred_element_type=jnp.float32) + b2
        diff = out - targets_ref[:, i * state_dim:(i + 1) * state_dim].astype(
            jnp.float32)
        # discount**i is a Python float -> folded in as a constant.
        sq_acc = sq_acc + discounts[i] * (diff * diff)

    # Single XLU reduction per tile; 1/(B*S) normalizer folded in here.
    partial = jnp.sum(sq_acc) * inv_n
    # Lane-dense unmasked store of the per-tile partial (read back at [0, 0]).
    out_ref[...] = jnp.full(out_ref.shape, partial, dtype=jnp.float32)


def multi_step_loss(state, actions, target_states, params, discount=0.99):
    """Multi-step discounted MSE loss of a residual MLP dynamics rollout.

    state:         (B, S)
    actions:       (B, T, A)
    target_states: (B, T, S)
    params:        (W1s (S,H), W1a (A,H), b1 (1,H), W2 (H,S), b2 (1,S))
    Returns a scalar float32.
    """
    w1s, w1a, b1, w2, b2 = params
    B, S = state.shape
    _, T, A = actions.shape
    H = w1s.shape[1]
    assert actions.shape[0] == B
    assert target_states.shape == (B, T, S)

    # Free contiguous reshapes (no transpose / extra HBM pass); the kernel
    # slices each rollout step out with static lane slices.
    actions_flat = actions.reshape(B, T * A)             # (B, T*A)
    targets_flat = target_states.reshape(B, T * S)       # (B, T*S)

    # Batch tiling: one block for small/medium B, 512-row tiles otherwise.
    tb_cap = 512
    if B <= tb_cap:
        tb = B
    else:
        tb = tb_cap
        # TODO(synk): general B needs pl.cdiv + a row mask excluding padded
        #             rows from the squared-error sum and from inv_n.
        assert B % tb == 0, "batch must be divisible by the batch tile size"
    nb = B // tb

    discounts = tuple(float(discount) ** i for i in range(T))
    inv_n = 1.0 / float(B * S)                            # MSE normalizer

    kernel = functools.partial(_multi_step_loss_kernel,
                               num_steps=T, action_dim=A, state_dim=S,
                               discounts=discounts, inv_n=inv_n)

    # Advisory cost estimate so XLA can overlap this small call with
    # surrounding graph work.
    flops = 2 * B * T * (S * H + A * H + H * S)
    bytes_accessed = 4 * (B * S + B * T * A + B * T * S
                          + S * H + A * H + H + H * S + S
                          + nb * 8 * 128)

    partials = pl.pallas_call(
        kernel,
        out_shape=jax.ShapeDtypeStruct((nb * 8, 128), jnp.float32),
        grid=(nb,),
        in_specs=[
            pl.BlockSpec((tb, S), lambda b: (b, 0)),          # state tile
            pl.BlockSpec((tb, T * A), lambda b: (b, 0)),      # actions tile
            pl.BlockSpec((tb, T * S), lambda b: (b, 0)),      # targets tile
            pl.BlockSpec((S, H), lambda b: (0, 0)),           # W1 (state part)
            pl.BlockSpec((A, H), lambda b: (0, 0)),           # W1 (action part)
            pl.BlockSpec((1, H), lambda b: (0, 0)),           # b1
            pl.BlockSpec((H, S), lambda b: (0, 0)),           # W2
            pl.BlockSpec((1, S), lambda b: (0, 0)),           # b2
        ],
        out_specs=pl.BlockSpec((8, 128), lambda b: (b, 0)),   # per-tile partial
        compiler_params=pltpu.CompilerParams(
            dimension_semantics=("parallel",),
            vmem_limit_bytes=32 * 1024 * 1024),
        cost_estimate=pl.CostEstimate(flops=flops, transcendentals=0,
                                      bytes_accessed=bytes_accessed),
    )(state, actions_flat, targets_flat, w1s, w1a, b1, w2, b2)

    # Each tile broadcast its partial across an (8, 128) block; read one
    # scalar per tile and sum (nb scalars).
    return jnp.sum(partials[::8, 0])


def _reference_multi_step_loss(state, actions, target_states, params,
                               discount=0.99):
    """Pure-JAX reference matching the PyTorch MultiStepLoss semantics."""
    w1s, w1a, b1, w2, b2 = params
    hi = jax.lax.Precision.HIGHEST
    out = state.astype(jnp.float32)
    total = jnp.float32(0.0)
    for i in range(actions.shape[1]):
        h = jax.nn.relu(jnp.dot(out, w1s, precision=hi)
                        + jnp.dot(actions[:, i], w1a, precision=hi) + b1)
        out = out + jnp.dot(h, w2, precision=hi) + b2
        total = total + (discount ** i) * jnp.mean(
            (out - target_states[:, i]) ** 2)
    return total


if __name__ == "__main__":
    # Small shapes implied by the forward: batch=8, T=4 rollout steps,
    # state_dim=3 (SE(2) pose), action_dim=3, hidden=32.
    B, T, S, A, H = 8, 4, 3, 3, 32
    discount = 0.99

    key = jax.random.PRNGKey(0)
    ks = jax.random.split(key, 8)
    state = jax.random.normal(ks[0], (B, S), dtype=jnp.float32)
    actions = jax.random.normal(ks[1], (B, T, A), dtype=jnp.float32)
    target_states = jax.random.normal(ks[2], (B, T, S), dtype=jnp.float32)

    params = (
        0.1 * jax.random.normal(ks[3], (S, H), dtype=jnp.float32),  # W1 state
        0.1 * jax.random.normal(ks[4], (A, H), dtype=jnp.float32),  # W1 action
        0.1 * jax.random.normal(ks[5], (1, H), dtype=jnp.float32),  # b1
        0.1 * jax.random.normal(ks[6], (H, S), dtype=jnp.float32),  # W2
        0.1 * jax.random.normal(ks[7], (1, S), dtype=jnp.float32),  # b2
    )

    loss = multi_step_loss(state, actions, target_states, params, discount)
    loss = jax.block_until_ready(loss)

    ref = jax.block_until_ready(
        _reference_multi_step_loss(state, actions, target_states, params,
                                   discount))
    np.testing.assert_allclose(np.asarray(loss), np.asarray(ref),
                               rtol=5e-3, atol=5e-4)

    print("KERNEL_OK")
</pallas_src>

<mosaic_0001>
module attributes {stable_mosaic.version = 11 : i64} {
  func.func @_multi_step_loss_kernel(%arg0: i32, %arg1: memref<8x3xf32, #tpu.memory_space<vmem>>, %arg2: memref<8x12xf32, #tpu.memory_space<vmem>>, %arg3: memref<8x12xf32, #tpu.memory_space<vmem>>, %arg4: memref<3x32xf32, #tpu.memory_space<vmem>>, %arg5: memref<3x32xf32, #tpu.memory_space<vmem>>, %arg6: memref<1x32xf32, #tpu.memory_space<vmem>>, %arg7: memref<32x3xf32, #tpu.memory_space<vmem>>, %arg8: memref<1x3xf32, #tpu.memory_space<vmem>>, %arg9: memref<8x128xf32, #tpu.memory_space<vmem>>) attributes {dimension_semantics = [#tpu.dimension_semantics<parallel>], iteration_bounds = array<i64: 1>, scalar_prefetch = 0 : i64, scratch_operands = 0 : i64, tpu.core_type = #tpu.core_type<tc>, window_params = [{transform_indices = @transform_0, window_bounds = array<i64: 8, 3>}, {transform_indices = @transform_1, window_bounds = array<i64: 8, 12>}, {transform_indices = @transform_2, window_bounds = array<i64: 8, 12>}, {pipeline_mode = #tpu.pipeline_mode<synchronous>, transform_indices = @transform_3, window_bounds = array<i64: 3, 32>}, {pipeline_mode = #tpu.pipeline_mode<synchronous>, transform_indices = @transform_4, window_bounds = array<i64: 3, 32>}, {pipeline_mode = #tpu.pipeline_mode<synchronous>, transform_indices = @transform_5, window_bounds = array<i64: 1, 32>}, {pipeline_mode = #tpu.pipeline_mode<synchronous>, transform_indices = @transform_6, window_bounds = array<i64: 32, 3>}, {pipeline_mode = #tpu.pipeline_mode<synchronous>, transform_indices = @transform_7, window_bounds = array<i64: 1, 3>}, {transform_indices = @transform_8, window_bounds = array<i64: 8, 128>}]} {
    %c0 = arith.constant 0 : index
    %c0_0 = arith.constant 0 : index
    %0 = vector.load %arg4[%c0, %c0_0] : memref<3x32xf32, #tpu.memory_space<vmem>>, vector<3x32xf32>
    %c0_1 = arith.constant 0 : index
    %c0_2 = arith.constant 0 : index
    %1 = vector.load %arg5[%c0_1, %c0_2] : memref<3x32xf32, #tpu.memory_space<vmem>>, vector<3x32xf32>
    %c0_3 = arith.constant 0 : index
    %c0_4 = arith.constant 0 : index
    %2 = vector.load %arg6[%c0_3, %c0_4] : memref<1x32xf32, #tpu.memory_space<vmem>>, vector<1x32xf32>
    %c0_5 = arith.constant 0 : index
    %c0_6 = arith.constant 0 : index
    %3 = vector.load %arg7[%c0_5, %c0_6] : memref<32x3xf32, #tpu.memory_space<vmem>>, vector<32x3xf32>
    %c0_7 = arith.constant 0 : index
    %c0_8 = arith.constant 0 : index
    %4 = vector.load %arg8[%c0_7, %c0_8] : memref<1x3xf32, #tpu.memory_space<vmem>>, vector<1x3xf32>
    %c0_9 = arith.constant 0 : index
    %c0_10 = arith.constant 0 : index
    %5 = vector.load %arg1[%c0_9, %c0_10] : memref<8x3xf32, #tpu.memory_space<vmem>>, vector<8x3xf32>
    %c0_11 = arith.constant 0 : index
    %c0_12 = arith.constant 0 : index
    %6 = vector.load %arg2[%c0_11, %c0_12] : memref<8x12xf32, #tpu.memory_space<vmem>>, vector<8x3xf32>
    %cst = arith.constant dense<0.000000e+00> : vector<8x32xf32>
    %7 = tpu.matmul %6, %1, %cst {dimension_numbers = #tpu.dot_dimension_numbers<[1], [0], [0], [1], [0, 0, 1, 1], [], []>} : vector<8x3xf32>, vector<3x32xf32>, vector<8x32xf32> -> vector<8x32xf32>
    %8 = vector.broadcast %2 : vector<1x32xf32> to vector<8x32xf32>
    %9 = arith.addf %7, %8 : vector<8x32xf32>
    %c0_13 = arith.constant 0 : index
    %c3 = arith.constant 3 : index
    %10 = vector.load %arg2[%c0_13, %c3] : memref<8x12xf32, #tpu.memory_space<vmem>>, vector<8x3xf32>
    %cst_14 = arith.constant dense<0.000000e+00> : vector<8x32xf32>
    %11 = tpu.matmul %10, %1, %cst_14 {dimension_numbers = #tpu.dot_dimension_numbers<[1], [0], [0], [1], [0, 0, 1, 1], [], []>} : vector<8x3xf32>, vector<3x32xf32>, vector<8x32xf32> -> vector<8x32xf32>
    %12 = vector.broadcast %2 : vector<1x32xf32> to vector<8x32xf32>
    %13 = arith.addf %11, %12 : vector<8x32xf32>
    %c0_15 = arith.constant 0 : index
    %c6 = arith.constant 6 : index
    %14 = vector.load %arg2[%c0_15, %c6] : memref<8x12xf32, #tpu.memory_space<vmem>>, vector<8x3xf32>
    %cst_16 = arith.constant dense<0.000000e+00> : vector<8x32xf32>
    %15 = tpu.matmul %14, %1, %cst_16 {dimension_numbers = #tpu.dot_dimension_numbers<[1], [0], [0], [1], [0, 0, 1, 1], [], []>} : vector<8x3xf32>, vector<3x32xf32>, vector<8x32xf32> -> vector<8x32xf32>
    %16 = vector.broadcast %2 : vector<1x32xf32> to vector<8x32xf32>
    %17 = arith.addf %15, %16 : vector<8x32xf32>
    %c0_17 = arith.constant 0 : index
    %c9 = arith.constant 9 : index
    %18 = vector.load %arg2[%c0_17, %c9] : memref<8x12xf32, #tpu.memory_space<vmem>>, vector<8x3xf32>
    %cst_18 = arith.constant dense<0.000000e+00> : vector<8x32xf32>
    %19 = tpu.matmul %18, %1, %cst_18 {dimension_numbers = #tpu.dot_dimension_numbers<[1], [0], [0], [1], [0, 0, 1, 1], [], []>} : vector<8x3xf32>, vector<3x32xf32>, vector<8x32xf32> -> vector<8x32xf32>
    %20 = vector.broadcast %2 : vector<1x32xf32> to vector<8x32xf32>
    %21 = arith.addf %19, %20 : vector<8x32xf32>
    %cst_19 = arith.constant 0.000000e+00 : f32
    %22 = vector.broadcast %cst_19 : f32 to vector<8x3xf32>
    %cst_20 = arith.constant dense<0.000000e+00> : vector<8x32xf32>
    %23 = tpu.matmul %5, %0, %cst_20 {dimension_numbers = #tpu.dot_dimension_numbers<[1], [0], [0], [1], [0, 0, 1, 1], [], []>} : vector<8x3xf32>, vector<3x32xf32>, vector<8x32xf32> -> vector<8x32xf32>
    %24 = arith.addf %23, %9 : vector<8x32xf32>
    %cst_21 = arith.constant 0.000000e+00 : f32
    %25 = vector.broadcast %cst_21 : f32 to vector<8x32xf32>
    %26 = arith.maximumf %24, %25 : vector<8x32xf32>
    %cst_22 = arith.constant dense<0.000000e+00> : vector<8x3xf32>
    %27 = tpu.matmul %26, %3, %cst_22 {dimension_numbers = #tpu.dot_dimension_numbers<[1], [0], [0], [1], [0, 0, 1, 1], [], []>} : vector<8x32xf32>, vector<32x3xf32>, vector<8x3xf32> -> vector<8x3xf32>
    %28 = arith.addf %5, %27 : vector<8x3xf32>
    %29 = vector.broadcast %4 : vector<1x3xf32> to vector<8x3xf32>
    %30 = arith.addf %28, %29 : vector<8x3xf32>
    %c0_23 = arith.constant 0 : index
    %c0_24 = arith.constant 0 : index
    %31 = vector.load %arg3[%c0_23, %c0_24] : memref<8x12xf32, #tpu.memory_space<vmem>>, vector<8x3xf32>
    %32 = arith.subf %30, %31 : vector<8x3xf32>
    %33 = arith.mulf %32, %32 : vector<8x3xf32>
    %cst_25 = arith.constant 1.000000e+00 : f32
    %34 = vector.broadcast %cst_25 : f32 to vector<8x3xf32>
    %35 = arith.mulf %34, %33 : vector<8x3xf32>
    %36 = arith.addf %22, %35 : vector<8x3xf32>
    %cst_26 = arith.constant dense<0.000000e+00> : vector<8x32xf32>
    %37 = tpu.matmul %30, %0, %cst_26 {dimension_numbers = #tpu.dot_dimension_numbers<[1], [0], [0], [1], [0, 0, 1, 1], [], []>} : vector<8x3xf32>, vector<3x32xf32>, vector<8x32xf32> -> vector<8x32xf32>
    %38 = arith.addf %37, %13 : vector<8x32xf32>
    %cst_27 = arith.constant 0.000000e+00 : f32
    %39 = vector.broadcast %cst_27 : f32 to vector<8x32xf32>
    %40 = arith.maximumf %38, %39 : vector<8x32xf32>
    %cst_28 = arith.constant dense<0.000000e+00> : vector<8x3xf32>
    %41 = tpu.matmul %40, %3, %cst_28 {dimension_numbers = #tpu.dot_dimension_numbers<[1], [0], [0], [1], [0, 0, 1, 1], [], []>} : vector<8x32xf32>, vector<32x3xf32>, vector<8x3xf32> -> vector<8x3xf32>
    %42 = arith.addf %30, %41 : vector<8x3xf32>
    %43 = vector.broadcast %4 : vector<1x3xf32> to vector<8x3xf32>
    %44 = arith.addf %42, %43 : vector<8x3xf32>
    %c0_29 = arith.constant 0 : index
    %c3_30 = arith.constant 3 : index
    %45 = vector.load %arg3[%c0_29, %c3_30] : memref<8x12xf32, #tpu.memory_space<vmem>>, vector<8x3xf32>
    %46 = arith.subf %44, %45 : vector<8x3xf32>
    %47 = arith.mulf %46, %46 : vector<8x3xf32>
    %cst_31 = arith.constant 9.900000e-01 : f32
    %48 = vector.broadcast %cst_31 : f32 to vector<8x3xf32>
    %49 = arith.mulf %48, %47 : vector<8x3xf32>
    %50 = arith.addf %36, %49 : vector<8x3xf32>
    %cst_32 = arith.constant dense<0.000000e+00> : vector<8x32xf32>
    %51 = tpu.matmul %44, %0, %cst_32 {dimension_numbers = #tpu.dot_dimension_numbers<[1], [0], [0], [1], [0, 0, 1, 1], [], []>} : vector<8x3xf32>, vector<3x32xf32>, vector<8x32xf32> -> vector<8x32xf32>
    %52 = arith.addf %51, %17 : vector<8x32xf32>
    %cst_33 = arith.constant 0.000000e+00 : f32
    %53 = vector.broadcast %cst_33 : f32 to vector<8x32xf32>
    %54 = arith.maximumf %52, %53 : vector<8x32xf32>
    %cst_34 = arith.constant dense<0.000000e+00> : vector<8x3xf32>
    %55 = tpu.matmul %54, %3, %cst_34 {dimension_numbers = #tpu.dot_dimension_numbers<[1], [0], [0], [1], [0, 0, 1, 1], [], []>} : vector<8x32xf32>, vector<32x3xf32>, vector<8x3xf32> -> vector<8x3xf32>
    %56 = arith.addf %44, %55 : vector<8x3xf32>
    %57 = vector.broadcast %4 : vector<1x3xf32> to vector<8x3xf32>
    %58 = arith.addf %56, %57 : vector<8x3xf32>
    %c0_35 = arith.constant 0 : index
    %c6_36 = arith.constant 6 : index
    %59 = vector.load %arg3[%c0_35, %c6_36] : memref<8x12xf32, #tpu.memory_space<vmem>>, vector<8x3xf32>
    %60 = arith.subf %58, %59 : vector<8x3xf32>
    %61 = arith.mulf %60, %60 : vector<8x3xf32>
    %cst_37 = arith.constant 0.980099976 : f32
    %62 = vector.broadcast %cst_37 : f32 to vector<8x3xf32>
    %63 = arith.mulf %62, %61 : vector<8x3xf32>
    %64 = arith.addf %50, %63 : vector<8x3xf32>
    %cst_38 = arith.constant dense<0.000000e+00> : vector<8x32xf32>
    %65 = tpu.matmul %58, %0, %cst_38 {dimension_numbers = #tpu.dot_dimension_numbers<[1], [0], [0], [1], [0, 0, 1, 1], [], []>} : vector<8x3xf32>, vector<3x32xf32>, vector<8x32xf32> -> vector<8x32xf32>
    %66 = arith.addf %65, %21 : vector<8x32xf32>
    %cst_39 = arith.constant 0.000000e+00 : f32
    %67 = vector.broadcast %cst_39 : f32 to vector<8x32xf32>
    %68 = arith.maximumf %66, %67 : vector<8x32xf32>
    %cst_40 = arith.constant dense<0.000000e+00> : vector<8x3xf32>
    %69 = tpu.matmul %68, %3, %cst_40 {dimension_numbers = #tpu.dot_dimension_numbers<[1], [0], [0], [1], [0, 0, 1, 1], [], []>} : vector<8x32xf32>, vector<32x3xf32>, vector<8x3xf32> -> vector<8x3xf32>
    %70 = arith.addf %58, %69 : vector<8x3xf32>
    %71 = vector.broadcast %4 : vector<1x3xf32> to vector<8x3xf32>
    %72 = arith.addf %70, %71 : vector<8x3xf32>
    %c0_41 = arith.constant 0 : index
    %c9_42 = arith.constant 9 : index
    %73 = vector.load %arg3[%c0_41, %c9_42] : memref<8x12xf32, #tpu.memory_space<vmem>>, vector<8x3xf32>
    %74 = arith.subf %72, %73 : vector<8x3xf32>
    %75 = arith.mulf %74, %74 : vector<8x3xf32>
    %cst_43 = arith.constant 9.702990e-01 : f32
    %76 = vector.broadcast %cst_43 : f32 to vector<8x3xf32>
    %77 = arith.mulf %76, %75 : vector<8x3xf32>
    %78 = arith.addf %64, %77 : vector<8x3xf32>
    %79 = vector.shape_cast %78 : vector<8x3xf32> to vector<1x8x3xf32>
    %cst_44 = arith.constant dense<0.000000e+00> : vector<1xf32>
    %80 = vector.multi_reduction <add>, %79, %cst_44 [1, 2] : vector<1x8x3xf32> to vector<1xf32>
    %81 = vector.shape_cast %80 : vector<1xf32> to vector<1x1x1xf32>
    %82 = vector.extract %81[0, 0, 0] : f32 from vector<1x1x1xf32>
    %cst_45 = arith.constant 0.0416666679 : f32
    %83 = arith.mulf %82, %cst_45 : f32
    %84 = vector.broadcast %83 : f32 to vector<8x128xf32>
    %c0_46 = arith.constant 0 : index
    %c0_47 = arith.constant 0 : index
    %85 = vector.load %arg9[%c0_46, %c0_47] : memref<8x128xf32, #tpu.memory_space<vmem>>, vector<8x128xf32>
    tpu.vector_store %arg9[%c0_46, %c0_47], %84 {strides = array<i32>} : memref<8x128xf32, #tpu.memory_space<vmem>>, vector<8x128xf32>,
    return
  }
  func.func @transform_0(%arg0: i32) -> (i32, i32) {
    %c0_i32 = arith.constant 0 : i32
    %c0_i32_0 = arith.constant 0 : i32
    return %arg0, %c0_i32 : i32, i32
  }
  func.func @transform_1(%arg0: i32) -> (i32, i32) {
    %c0_i32 = arith.constant 0 : i32
    %c0_i32_0 = arith.constant 0 : i32
    return %arg0, %c0_i32 : i32, i32
  }
  func.func @transform_2(%arg0: i32) -> (i32, i32) {
    %c0_i32 = arith.constant 0 : i32
    %c0_i32_0 = arith.constant 0 : i32
    return %arg0, %c0_i32 : i32, i32
  }
  func.func @transform_3(%arg0: i32) -> (i32, i32) {
    %c0_i32 = arith.constant 0 : i32
    %c0_i32_0 = arith.constant 0 : i32
    %c0_i32_1 = arith.constant 0 : i32
    return %c0_i32, %c0_i32_0 : i32, i32
  }
  func.func @transform_4(%arg0: i32) -> (i32, i32) {
    %c0_i32 = arith.constant 0 : i32
    %c0_i32_0 = arith.constant 0 : i32
    %c0_i32_1 = arith.constant 0 : i32
    return %c0_i32, %c0_i32_0 : i32, i32
  }
  func.func @transform_5(%arg0: i32) -> (i32, i32) {
    %c0_i32 = arith.constant 0 : i32
    %c0_i32_0 = arith.constant 0 : i32
    %c0_i32_1 = arith.constant 0 : i32
    return %c0_i32, %c0_i32_0 : i32, i32
  }
  func.func @transform_6(%arg0: i32) -> (i32, i32) {
    %c0_i32 = arith.constant 0 : i32
    %c0_i32_0 = arith.constant 0 : i32
    %c0_i32_1 = arith.constant 0 : i32
    return %c0_i32, %c0_i32_0 : i32, i32
  }
  func.func @transform_7(%arg0: i32) -> (i32, i32) {
    %c0_i32 = arith.constant 0 : i32
    %c0_i32_0 = arith.constant 0 : i32
    %c0_i32_1 = arith.constant 0 : i32
    return %c0_i32, %c0_i32_0 : i32, i32
  }
  func.func @transform_8(%arg0: i32) -> (i32, i32) {
    %c0_i32 = arith.constant 0 : i32
    %c0_i32_0 = arith.constant 0 : i32
    return %arg0, %c0_i32 : i32, i32
  }
}

</mosaic_0001>

<llo_original>
// kernel: tpu_custom_call.1
$region0: #{tpu_custom_call.1}
  #allocation0 [shape = 'u32[]', space=smem, size = 0x4, offset = 0x4, fixed_abs, tag = 'smem constant byte address 0x4 - core index']
  #allocation1 [shape = 'u32[144,128]{1,0:T(1,128)}', space=vmem, size = 0x12000, scoped, tag = 'internal scratch']
  %s0 = inlined_call_operand.vmem [shape: f32[8,3], index: 0, kind: input, shape index: {}]
  %s1 = inlined_call_operand.vmem [shape: f32[8,12], index: 1, kind: input, shape index: {}]
  %s2 = inlined_call_operand.vmem [shape: f32[8,12], index: 2, kind: input, shape index: {}]
  %s3 = inlined_call_operand.vmem [shape: f32[3,32], index: 3, kind: input, shape index: {}]
  %s4 = inlined_call_operand.vmem [shape: f32[3,32], index: 4, kind: input, shape index: {}]
  %s5 = inlined_call_operand.vmem [shape: f32[1,32], index: 5, kind: input, shape index: {}]
  %s6 = inlined_call_operand.vmem [shape: f32[32,3], index: 6, kind: input, shape index: {}]
  %s7 = inlined_call_operand.vmem [shape: f32[1,3], index: 7, kind: input, shape index: {}]
  %s8 = inlined_call_operand.hbm [shape: f32[8,128], index: 8, kind: output, shape index: {}]
  %s9 = sld [smem:[#allocation0]]
  $region42: #{tpu_custom_call.1} parent=0
    _
  %s11 = ssub.s32 1, %s9
  %s12 = scalar_select 0, %s11, %s9
  $region1: #{tpu_custom_call.1} parent=0
    #allocation2 [shape = 'u8[4096]{0}', space=vmem, size = 0x1000, scoped, tag = 'output window, operand 0, single buffered']
    #allocation3 [shape = 's32[1]{0}', space=sflag, size = 0x4, scoped, tag = 'scoped memory for tpu_custom_call.1']
    %13 = vsyncpa [#allocation3], 0
    // Predicated region
    $region2: #{tpu_custom_call.1} parent=1 // pred_check
      _
    $region3: #{tpu_custom_call.1} parent=1 // pred_check_branch
      %15 = sbr.rel (0) target = $region5
    $region4: #{tpu_custom_call.1} parent=1 // pred_region
      _
    $region5: #{tpu_custom_call.1} parent=1 // pred_fallthru
      _
    // Predicated region
    $region6: #{tpu_custom_call.1} parent=1 // pred_check
      _
    $region7: #{tpu_custom_call.1} parent=1 // pred_check_branch
      %17 = sbr.rel (0) target = $region9
    $region8: #{tpu_custom_call.1} parent=1 // pred_region
      _
    $region9: #{tpu_custom_call.1} parent=1 // pred_fallthru
      _
    // Predicated region
    $region10: #{tpu_custom_call.1} parent=1 // pred_check
      _
    $region11: #{tpu_custom_call.1} parent=1 // pred_check_branch
      %19 = sbr.rel (0) target = $region13
    $region12: #{tpu_custom_call.1} parent=1 // pred_region
      _
    $region13: #{tpu_custom_call.1} parent=1 // pred_fallthru
      _
    // Predicated region
    $region14: #{tpu_custom_call.1} parent=1 // pred_check
      _
    $region15: #{tpu_custom_call.1} parent=1 // pred_check_branch
      %21 = sbr.rel (0) target = $region17
    $region16: #{tpu_custom_call.1} parent=1 // pred_region
      _
    $region17: #{tpu_custom_call.1} parent=1 // pred_fallthru
      _
    // Predicated region
    $region18: #{tpu_custom_call.1} parent=1 // pred_check
      _
    $region19: #{tpu_custom_call.1} parent=1 // pred_check_branch
      %23 = sbr.rel (0) target = $region21
    $region20: #{tpu_custom_call.1} parent=1 // pred_region
      _
    $region21: #{tpu_custom_call.1} parent=1 // pred_fallthru
      _
    // Predicated region
    $region22: #{tpu_custom_call.1} parent=1 // pred_check
      _
    $region23: #{tpu_custom_call.1} parent=1 // pred_check_branch
      %25 = sbr.rel (0) target = $region25
    $region24: #{tpu_custom_call.1} parent=1 // pred_region
      _
    $region25: #{tpu_custom_call.1} parent=1 // pred_fallthru
      _
    // Predicated region
    $region26: #{tpu_custom_call.1} parent=1 // pred_check
      _
    $region27: #{tpu_custom_call.1} parent=1 // pred_check_branch
      %27 = sbr.rel (0) target = $region29
    $region28: #{tpu_custom_call.1} parent=1 // pred_region
      _
    $region29: #{tpu_custom_call.1} parent=1 // pred_fallthru
      _
    // Predicated region
    $region30: #{tpu_custom_call.1} parent=1 // pred_check
      _
    $region31: #{tpu_custom_call.1} parent=1 // pred_check_branch
      %29 = sbr.rel (0) target = $region33
    $region32: #{tpu_custom_call.1} parent=1 // pred_region
      _
    $region33: #{tpu_custom_call.1} parent=1 // pred_fallthru
      _
    %v30 = vld [vmem:[%s3] sm:$0x7]
    %v31 = vld [vmem:[%s4] sm:$0x7]
    %v32 = vld [vmem:[%s5] sm:$0x1]
    %v33 = vld [vmem:[%s6] sm:$0xff]
    %v34 = vld [vmem:[%s6 + $0x8] sm:$0xff]
    %v35 = vld [vmem:[%s6 + $0x10] sm:$0xff]
    %v36 = vld [vmem:[%s6 + $0x18] sm:$0xff]
    %v37 = vld [vmem:[%s7] sm:$0x1]
    %v38 = vld [vmem:[%s0] sm:$0xff]
    %v39 = vld [vmem:[%s1] sm:$0xff]
    %v41 = vlaneseq
    %v42 = vshrl.u32 %v41, 7
    %v43 = vsub.s32 0, %v42
    %v44 = vrot.slane %v32, %v43
    %vm46 = vcmask 23552
    %v48 = vsel %vm46, %v39, 0
    %vm50 = vcmask 1042432
    %v52 = vsel %vm50, %v31, 0
    %54 = vmatprep.subr.mxu0 0.0
    %55 = vmatpush1.msra.mxu0 0.0
    %56 = vmatprep.subr.mxu0 0.0
    %57 = vmatpush1.msra.mxu0 0.0
    %58 = vmatprep.subr.mxu0 0.0
    %59 = vmatpush1.msra.mxu0 0.0
    %60 = vmatprep.subr.mxu0 0.0
    %61 = vmatpush1.msra.mxu0 0.0
    %62 = vmatprep.subr.mxu0 0.0
    %63 = vmatpush1.msra.mxu0 0.0
    %64 = vmatprep.subr.mxu0 0.0
    %65 = vmatpush1.msra.mxu0 0.0
    %66 = vmatprep.subr.mxu0 0.0
    %67 = vmatpush1.msra.mxu0 0.0
    %68 = vmatprep.subr.mxu0 0.0
    %69 = vmatpush1.msra.mxu0 0.0
    %70 = vmatprep.subr.mxu0 0.0
    %71 = vmatpush1.msra.mxu0 0.0
    %72 = vmatprep.subr.mxu0 0.0
    %73 = vmatpush1.msra.mxu0 0.0
    %74 = vmatprep.subr.mxu0 0.0
    %75 = vmatpush1.msra.mxu0 0.0
    %76 = vmatprep.subr.mxu0 0.0
    %77 = vmatpush1.msra.mxu0 0.0
    %78 = vmatprep.subr.mxu0 0.0
    %79 = vmatpush1.msra.mxu0 0.0
    %80 = vmatprep.subr.mxu0 0.0
    %81 = vmatpush1.msra.mxu0 0.0
    %82 = vmatprep.subr.mxu0 0.0
    %83 = vmatpush1.msra.mxu0 0.0
    %84 = vmatprep.subr.mxu0 0.0
    %85 = vmatpush1.msra.mxu0 %v52
    %86 = vmatprep.subr.mxu0 0.0
    %87 = vmatpush2.msra.mxu0 0.0
    %88 = vmatprep.subr.mxu0 0.0
    %89 = vmatpush2.msra.mxu0 0.0
    %90 = vmatprep.subr.mxu0 0.0
    %91 = vmatpush2.msra.mxu0 0.0
    %92 = vmatprep.subr.mxu0 0.0
    %93 = vmatpush2.msra.mxu0 0.0
    %94 = vmatprep.subr.mxu0 0.0
    %95 = vmatpush2.msra.mxu0 0.0
    %96 = vmatprep.subr.mxu0 0.0
    %97 = vmatpush2.msra.mxu0 0.0
    %98 = vmatprep.subr.mxu0 0.0
    %99 = vmatpush2.msra.mxu0 0.0
    %100 = vmatprep.subr.mxu0 0.0
    %101 = vmatpush2.msra.mxu0 0.0
    %102 = vmatprep.subr.mxu0 0.0
    %103 = vmatpush2.msra.mxu0 0.0
    %104 = vmatprep.subr.mxu0 0.0
    %105 = vmatpush2.msra.mxu0 0.0
    %106 = vmatprep.subr.mxu0 0.0
    %107 = vmatpush2.msra.mxu0 0.0
    %108 = vmatprep.subr.mxu0 0.0
    %109 = vmatpush2.msra.mxu0 0.0
    %110 = vmatprep.subr.mxu0 0.0
    %111 = vmatpush2.msra.mxu0 0.0
    %112 = vmatprep.subr.mxu0 0.0
    %113 = vmatpush2.msra.mxu0 0.0
    %114 = vmatprep.subr.mxu0 0.0
    %115 = vmatpush2.msra.mxu0 0.0
    %116 = vmatprep.subr.mxu0 0.0
    %117 = vmatpush2.msra.mxu0 0.0
    %118 = vmatprep.mubr.f32.mxu0 0.0
    %119 = vmatmul.mubr.f32.gmra.mxu0 %v48
    %v120 = vpop.f32.mrf.mxu0
    %v121 = vadd.f32 %v44, %v120
    %v122 = vpop.f32.mrf.mxu0
    %123 = vdwg.mxu0
    %124 = vrot.lane.b32.xlu0 %v39, 125
    %v125 = vpop.permute.xlu0 %124
    %v126 = vsel %vm46, %v125, 0
    %128 = vmatprep.subr.mxu0 0.0
    %129 = vmatpush1.msra.mxu0 0.0
    %130 = vmatprep.subr.mxu0 0.0
    %131 = vmatpush1.msra.mxu0 0.0
    %132 = vmatprep.subr.mxu0 0.0
    %133 = vmatpush1.msra.mxu0 0.0
    %134 = vmatprep.subr.mxu0 0.0
    %135 = vmatpush1.msra.mxu0 0.0
    %136 = vmatprep.subr.mxu0 0.0
    %137 = vmatpush1.msra.mxu0 0.0
    %138 = vmatprep.subr.mxu0 0.0
    %139 = vmatpush1.msra.mxu0 0.0
    %140 = vmatprep.subr.mxu0 0.0
    %141 = vmatpush1.msra.mxu0 0.0
    %142 = vmatprep.subr.mxu0 0.0
    %143 = vmatpush1.msra.mxu0 0.0
    %144 = vmatprep.subr.mxu0 0.0
    %145 = vmatpush1.msra.mxu0 0.0
    %146 = vmatprep.subr.mxu0 0.0
    %147 = vmatpush1.msra.mxu0 0.0
    %148 = vmatprep.subr.mxu0 0.0
    %149 = vmatpush1.msra.mxu0 0.0
    %150 = vmatprep.subr.mxu0 0.0
    %151 = vmatpush1.msra.mxu0 0.0
    %152 = vmatprep.subr.mxu0 0.0
    %153 = vmatpush1.msra.mxu0 0.0
    %154 = vmatprep.subr.mxu0 0.0
    %155 = vmatpush1.msra.mxu0 0.0
    %156 = vmatprep.subr.mxu0 0.0
    %157 = vmatpush1.msra.mxu0 0.0
    %158 = vmatprep.subr.mxu0 0.0
    %159 = vmatpush1.msra.mxu0 %v52
    %160 = vmatprep.subr.mxu0 0.0
    %161 = vmatpush2.msra.mxu0 0.0
    %162 = vmatprep.subr.mxu0 0.0
    %163 = vmatpush2.msra.mxu0 0.0
    %164 = vmatprep.subr.mxu0 0.0
    %165 = vmatpush2.msra.mxu0 0.0
    %166 = vmatprep.subr.mxu0 0.0
    %167 = vmatpush2.msra.mxu0 0.0
    %168 = vmatprep.subr.mxu0 0.0
    %169 = vmatpush2.msra.mxu0 0.0
    %170 = vmatprep.subr.mxu0 0.0
    %171 = vmatpush2.msra.mxu0 0.0
    %172 = vmatprep.subr.mxu0 0.0
    %173 = vmatpush2.msra.mxu0 0.0
    %174 = vmatprep.subr.mxu0 0.0
    %175 = vmatpush2.msra.mxu0 0.0
    %176 = vmatprep.subr.mxu0 0.0
    %177 = vmatpush2.msra.mxu0 0.0
    %178 = vmatprep.subr.mxu0 0.0
    %179 = vmatpush2.msra.mxu0 0.0
    %180 = vmatprep.subr.mxu0 0.0
    %181 = vmatpush2.msra.mxu0 0.0
    %182 = vmatprep.subr.mxu0 0.0
    %183 = vmatpush2.msra.mxu0 0.0
    %184 = vmatprep.subr.mxu0 0.0
    %185 = vmatpush2.msra.mxu0 0.0
    %186 = vmatprep.subr.mxu0 0.0
    %187 = vmatpush2.msra.mxu0 0.0
    %188 = vmatprep.subr.mxu0 0.0
    %189 = vmatpush2.msra.mxu0 0.0
    %190 = vmatprep.subr.mxu0 0.0
    %191 = vmatpush2.msra.mxu0 0.0
    %192 = vmatprep.mubr.f32.mxu0 0.0
    %193 = vmatmul.mubr.f32.gmra.mxu0 %v126
    %v194 = vpop.f32.mrf.mxu0
    %v195 = vadd.f32 %v44, %v194
    %v196 = vpop.f32.mrf.mxu0
    %197 = vdwg.mxu0
    %198 = vrot.lane.b32.xlu0 %v39, 122
    %v199 = vpop.permute.xlu0 %198
    %v200 = vsel %vm46, %v199, 0
    %202 = vmatprep.subr.mxu0 0.0
    %203 = vmatpush1.msra.mxu0 0.0
    %204 = vmatprep.subr.mxu0 0.0
    %205 = vmatpush1.msra.mxu0 0.0
    %206 = vmatprep.subr.mxu0 0.0
    %207 = vmatpush1.msra.mxu0 0.0
    %208 = vmatprep.subr.mxu0 0.0
    %209 = vmatpush1.msra.mxu0 0.0
    %210 = vmatprep.subr.mxu0 0.0
    %211 = vmatpush1.msra.mxu0 0.0
    %212 = vmatprep.subr.mxu0 0.0
    %213 = vmatpush1.msra.mxu0 0.0
    %214 = vmatprep.subr.mxu0 0.0
    %215 = vmatpush1.msra.mxu0 0.0
    %216 = vmatprep.subr.mxu0 0.0
    %217 = vmatpush1.msra.mxu0 0.0
    %218 = vmatprep.subr.mxu0 0.0
    %219 = vmatpush1.msra.mxu0 0.0
    %220 = vmatprep.subr.mxu0 0.0
    %221 = vmatpush1.msra.mxu0 0.0
    %222 = vmatprep.subr.mxu0 0.0
    %223 = vmatpush1.msra.mxu0 0.0
    %224 = vmatprep.subr.mxu0 0.0
    %225 = vmatpush1.msra.mxu0 0.0
    %226 = vmatprep.subr.mxu0 0.0
    %227 = vmatpush1.msra.mxu0 0.0
    %228 = vmatprep.subr.mxu0 0.0
    %229 = vmatpush1.msra.mxu0 0.0
    %230 = vmatprep.subr.mxu0 0.0
    %231 = vmatpush1.msra.mxu0 0.0
    %232 = vmatprep.subr.mxu0 0.0
    %233 = vmatpush1.msra.mxu0 %v52
    %234 = vmatprep.subr.mxu0 0.0
    %235 = vmatpush2.msra.mxu0 0.0
    %236 = vmatprep.subr.mxu0 0.0
    %237 = vmatpush2.msra.mxu0 0.0
    %238 = vmatprep.subr.mxu0 0.0
    %239 = vmatpush2.msra.mxu0 0.0
    %240 = vmatprep.subr.mxu0 0.0
    %241 = vmatpush2.msra.mxu0 0.0
    %242 = vmatprep.subr.mxu0 0.0
    %243 = vmatpush2.msra.mxu0 0.0
    %244 = vmatprep.subr.mxu0 0.0
    %245 = vmatpush2.msra.mxu0 0.0
    %246 = vmatprep.subr.mxu0 0.0
    %247 = vmatpush2.msra.mxu0 0.0
    %248 = vmatprep.subr.mxu0 0.0
    %249 = vmatpush2.msra.mxu0 0.0
    %250 = vmatprep.subr.mxu0 0.0
    %251 = vmatpush2.msra.mxu0 0.0
    %252 = vmatprep.subr.mxu0 0.0
    %253 = vmatpush2.msra.mxu0 0.0
    %254 = vmatprep.subr.mxu0 0.0
    %255 = vmatpush2.msra.mxu0 0.0
    %256 = vmatprep.subr.mxu0 0.0
    %257 = vmatpush2.msra.mxu0 0.0
    %258 = vmatprep.subr.mxu0 0.0
    %259 = vmatpush2.msra.mxu0 0.0
    %260 = vmatprep.subr.mxu0 0.0
    %261 = vmatpush2.msra.mxu0 0.0
    %262 = vmatprep.subr.mxu0 0.0
    %263 = vmatpush2.msra.mxu0 0.0
    %264 = vmatprep.subr.mxu0 0.0
    %265 = vmatpush2.msra.mxu0 0.0
    %266 = vmatprep.mubr.f32.mxu0 0.0
    %267 = vmatmul.mubr.f32.gmra.mxu0 %v200
    %v268 = vpop.f32.mrf.mxu0
    %v269 = vadd.f32 %v44, %v268
    %v270 = vpop.f32.mrf.mxu0
    %271 = vdwg.mxu0
    %272 = vrot.lane.b32.xlu0 %v39, 119
    %v273 = vpop.permute.xlu0 %272
    %v274 = vsel %vm46, %v273, 0
    %276 = vmatprep.subr.mxu0 0.0
    %277 = vmatpush1.msra.mxu0 0.0
    %278 = vmatprep.subr.mxu0 0.0
    %279 = vmatpush1.msra.mxu0 0.0
    %280 = vmatprep.subr.mxu0 0.0
    %281 = vmatpush1.msra.mxu0 0.0
    %282 = vmatprep.subr.mxu0 0.0
    %283 = vmatpush1.msra.mxu0 0.0
    %284 = vmatprep.subr.mxu0 0.0
    %285 = vmatpush1.msra.mxu0 0.0
    %286 = vmatprep.subr.mxu0 0.0
    %287 = vmatpush1.msra.mxu0 0.0
    %288 = vmatprep.subr.mxu0 0.0
    %289 = vmatpush1.msra.mxu0 0.0
    %290 = vmatprep.subr.mxu0 0.0
    %291 = vmatpush1.msra.mxu0 0.0
    %292 = vmatprep.subr.mxu0 0.0
    %293 = vmatpush1.msra.mxu0 0.0
    %294 = vmatprep.subr.mxu0 0.0
    %295 = vmatpush1.msra.mxu0 0.0
    %296 = vmatprep.subr.mxu0 0.0
    %297 = vmatpush1.msra.mxu0 0.0
    %298 = vmatprep.subr.mxu0 0.0
    %299 = vmatpush1.msra.mxu0 0.0
    %300 = vmatprep.subr.mxu0 0.0
    %301 = vmatpush1.msra.mxu0 0.0
    %302 = vmatprep.subr.mxu0 0.0
    %303 = vmatpush1.msra.mxu0 0.0
    %304 = vmatprep.subr.mxu0 0.0
    %305 = vmatpush1.msra.mxu0 0.0
    %306 = vmatprep.subr.mxu0 0.0
    %307 = vmatpush1.msra.mxu0 %v52
    %308 = vmatprep.subr.mxu0 0.0
    %309 = vmatpush2.msra.mxu0 0.0
    %310 = vmatprep.subr.mxu0 0.0
    %311 = vmatpush2.msra.mxu0 0.0
    %312 = vmatprep.subr.mxu0 0.0
    %313 = vmatpush2.msra.mxu0 0.0
    %314 = vmatprep.subr.mxu0 0.0
    %315 = vmatpush2.msra.mxu0 0.0
    %316 = vmatprep.subr.mxu0 0.0
    %317 = vmatpush2.msra.mxu0 0.0
    %318 = vmatprep.subr.mxu0 0.0
    %319 = vmatpush2.msra.mxu0 0.0
    %320 = vmatprep.subr.mxu0 0.0
    %321 = vmatpush2.msra.mxu0 0.0
    %322 = vmatprep.subr.mxu0 0.0
    %323 = vmatpush2.msra.mxu0 0.0
    %324 = vmatprep.subr.mxu0 0.0
    %325 = vmatpush2.msra.mxu0 0.0
    %326 = vmatprep.subr.mxu0 0.0
    %327 = vmatpush2.msra.mxu0 0.0
    %328 = vmatprep.subr.mxu0 0.0
    %329 = vmatpush2.msra.mxu0 0.0
    %330 = vmatprep.subr.mxu0 0.0
    %331 = vmatpush2.msra.mxu0 0.0
    %332 = vmatprep.subr.mxu0 0.0
    %333 = vmatpush2.msra.mxu0 0.0
    %334 = vmatprep.subr.mxu0 0.0
    %335 = vmatpush2.msra.mxu0 0.0
    %336 = vmatprep.subr.mxu0 0.0
    %337 = vmatpush2.msra.mxu0 0.0
    %338 = vmatprep.subr.mxu0 0.0
    %339 = vmatpush2.msra.mxu0 0.0
    %340 = vmatprep.mubr.f32.mxu0 0.0
    %341 = vmatmul.mubr.f32.gmra.mxu0 %v274
    %v342 = vpop.f32.mrf.mxu0
    %v343 = vadd.f32 %v44, %v342
    %v344 = vpop.f32.mrf.mxu0
    %345 = vdwg.mxu0
    %v347 = vsel %vm46, %v38, 0
    %v350 = vsel %vm50, %v30, 0
    %352 = vmatprep.subr.mxu0 0.0
    %353 = vmatpush1.msra.mxu0 0.0
    %354 = vmatprep.subr.mxu0 0.0
    %355 = vmatpush1.msra.mxu0 0.0
    %356 = vmatprep.subr.mxu0 0.0
    %357 = vmatpush1.msra.mxu0 0.0
    %358 = vmatprep.subr.mxu0 0.0
    %359 = vmatpush1.msra.mxu0 0.0
    %360 = vmatprep.subr.mxu0 0.0
    %361 = vmatpush1.msra.mxu0 0.0
    %362 = vmatprep.subr.mxu0 0.0
    %363 = vmatpush1.msra.mxu0 0.0
    %364 = vmatprep.subr.mxu0 0.0
    %365 = vmatpush1.msra.mxu0 0.0
    %366 = vmatprep.subr.mxu0 0.0
    %367 = vmatpush1.msra.mxu0 0.0
    %368 = vmatprep.subr.mxu0 0.0
    %369 = vmatpush1.msra.mxu0 0.0
    %370 = vmatprep.subr.mxu0 0.0
    %371 = vmatpush1.msra.mxu0 0.0
    %372 = vmatprep.subr.mxu0 0.0
    %373 = vmatpush1.msra.mxu0 0.0
    %374 = vmatprep.subr.mxu0 0.0
    %375 = vmatpush1.msra.mxu0 0.0
    %376 = vmatprep.subr.mxu0 0.0
    %377 = vmatpush1.msra.mxu0 0.0
    %378 = vmatprep.subr.mxu0 0.0
    %379 = vmatpush1.msra.mxu0 0.0
    %380 = vmatprep.subr.mxu0 0.0
    %381 = vmatpush1.msra.mxu0 0.0
    %382 = vmatprep.subr.mxu0 0.0
    %383 = vmatpush1.msra.mxu0 %v350
    %384 = vmatprep.subr.mxu0 0.0
    %385 = vmatpush2.msra.mxu0 0.0
    %386 = vmatprep.subr.mxu0 0.0
    %387 = vmatpush2.msra.mxu0 0.0
    %388 = vmatprep.subr.mxu0 0.0
    %389 = vmatpush2.msra.mxu0 0.0
    %390 = vmatprep.subr.mxu0 0.0
    %391 = vmatpush2.msra.mxu0 0.0
    %392 = vmatprep.subr.mxu0 0.0
    %393 = vmatpush2.msra.mxu0 0.0
    %394 = vmatprep.subr.mxu0 0.0
    %395 = vmatpush2.msra.mxu0 0.0
    %396 = vmatprep.subr.mxu0 0.0
    %397 = vmatpush2.msra.mxu0 0.0
    %398 = vmatprep.subr.mxu0 0.0
    %399 = vmatpush2.msra.mxu0 0.0
    %400 = vmatprep.subr.mxu0 0.0
    %401 = vmatpush2.msra.mxu0 0.0
    %402 = vmatprep.subr.mxu0 0.0
    %403 = vmatpush2.msra.mxu0 0.0
    %404 = vmatprep.subr.mxu0 0.0
    %405 = vmatpush2.msra.mxu0 0.0
    %406 = vmatprep.subr.mxu0 0.0
    %407 = vmatpush2.msra.mxu0 0.0
    %408 = vmatprep.subr.mxu0 0.0
    %409 = vmatpush2.msra.mxu0 0.0
    %410 = vmatprep.subr.mxu0 0.0
    %411 = vmatpush2.msra.mxu0 0.0
    %412 = vmatprep.subr.mxu0 0.0
    %413 = vmatpush2.msra.mxu0 0.0
    %414 = vmatprep.subr.mxu0 0.0
    %415 = vmatpush2.msra.mxu0 0.0
    %416 = vmatprep.mubr.f32.mxu0 0.0
    %417 = vmatmul.mubr.f32.gmra.mxu0 %v347
    %v418 = vpop.f32.mrf.mxu0
    %v419 = vadd.f32 %v121, %v418
    %v420 = vpop.f32.mrf.mxu0
    %421 = vdwg.mxu0
    %v422 = vmax.f32 %v419, 0.0
    %vm423 = vcmask 261120
    %v425 = vsel %vm423, %v422, 0
    %427 = vmatprep.subr.mxu0 0.0
    %428 = vmatpush1.msra.mxu0 0.0
    %429 = vmatprep.subr.mxu0 0.0
    %430 = vmatpush1.msra.mxu0 0.0
    %431 = vmatprep.subr.mxu0 0.0
    %432 = vmatpush1.msra.mxu0 0.0
    %433 = vmatprep.subr.mxu0 0.0
    %434 = vmatpush1.msra.mxu0 0.0
    %435 = vmatprep.subr.mxu0 0.0
    %436 = vmatpush1.msra.mxu0 0.0
    %437 = vmatprep.subr.mxu0 0.0
    %438 = vmatpush1.msra.mxu0 0.0
    %439 = vmatprep.subr.mxu0 0.0
    %440 = vmatpush1.msra.mxu0 0.0
    %441 = vmatprep.subr.mxu0 0.0
    %442 = vmatpush1.msra.mxu0 0.0
    %443 = vmatprep.subr.mxu0 0.0
    %444 = vmatpush1.msra.mxu0 0.0
    %445 = vmatprep.subr.mxu0 0.0
    %446 = vmatpush1.msra.mxu0 0.0
    %447 = vmatprep.subr.mxu0 0.0
    %448 = vmatpush1.msra.mxu0 0.0
    %449 = vmatprep.subr.mxu0 0.0
    %450 = vmatpush1.msra.mxu0 0.0
    %451 = vmatprep.subr.mxu0 0.0
    %452 = vmatpush1.msra.mxu0 %v36
    %453 = vmatprep.subr.mxu0 0.0
    %454 = vmatpush1.msra.mxu0 %v35
    %455 = vmatprep.subr.mxu0 0.0
    %456 = vmatpush1.msra.mxu0 %v34
    %457 = vmatprep.subr.mxu0 0.0
    %458 = vmatpush1.msra.mxu0 %v33
    %459 = vmatprep.subr.mxu0 0.0
    %460 = vmatpush2.msra.mxu0 0.0
    %461 = vmatprep.subr.mxu0 0.0
    %462 = vmatpush2.msra.mxu0 0.0
    %463 = vmatprep.subr.mxu0 0.0
    %464 = vmatpush2.msra.mxu0 0.0
    %465 = vmatprep.subr.mxu0 0.0
    %466 = vmatpush2.msra.mxu0 0.0
    %467 = vmatprep.subr.mxu0 0.0
    %468 = vmatpush2.msra.mxu0 0.0
    %469 = vmatprep.subr.mxu0 0.0
    %470 = vmatpush2.msra.mxu0 0.0
    %471 = vmatprep.subr.mxu0 0.0
    %472 = vmatpush2.msra.mxu0 0.0
    %473 = vmatprep.subr.mxu0 0.0
    %474 = vmatpush2.msra.mxu0 0.0
    %475 = vmatprep.subr.mxu0 0.0
    %476 = vmatpush2.msra.mxu0 0.0
    %477 = vmatprep.subr.mxu0 0.0
    %478 = vmatpush2.msra.mxu0 0.0
    %479 = vmatprep.subr.mxu0 0.0
    %480 = vmatpush2.msra.mxu0 0.0
    %481 = vmatprep.subr.mxu0 0.0
    %482 = vmatpush2.msra.mxu0 0.0
    %483 = vmatprep.subr.mxu0 0.0
    %484 = vmatpush2.msra.mxu0 0.0
    %485 = vmatprep.subr.mxu0 0.0
    %486 = vmatpush2.msra.mxu0 0.0
    %487 = vmatprep.subr.mxu0 0.0
    %488 = vmatpush2.msra.mxu0 0.0
    %489 = vmatprep.subr.mxu0 0.0
    %490 = vmatpush2.msra.mxu0 0.0
    %491 = vmatprep.mubr.f32.mxu0 0.0
    %492 = vmatmul.mubr.f32.gmra.mxu0 %v425
    %v493 = vpop.f32.mrf.mxu0
    %v494 = vadd.f32 0.0, %v493
    %v495 = vpop.f32.mrf.mxu0
    %496 = vdwg.mxu0
    %v497 = vadd.f32 %v38, %v494
    %v499 = vlaneseq
    %v500 = vshrl.u32 %v499, 7
    %v501 = vsub.s32 0, %v500
    %v502 = vrot.slane %v37, %v501
    %v504 = vadd.f32 %v497, %v502
    %v505 = vld [vmem:[%s2] sm:$0xff]
    %v506 = vsub.f32 %v504, %v505
    %v507 = vmul.f32 %v506, %v506
    %v508 = vadd.f32 %v507, 0.0
    %v510 = vsel %vm46, %v504, 0
    %512 = vmatprep.subr.mxu0 0.0
    %513 = vmatpush1.msra.mxu0 0.0
    %514 = vmatprep.subr.mxu0 0.0
    %515 = vmatpush1.msra.mxu0 0.0
    %516 = vmatprep.subr.mxu0 0.0
    %517 = vmatpush1.msra.mxu0 0.0
    %518 = vmatprep.subr.mxu0 0.0
    %519 = vmatpush1.msra.mxu0 0.0
    %520 = vmatprep.subr.mxu0 0.0
    %521 = vmatpush1.msra.mxu0 0.0
    %522 = vmatprep.subr.mxu0 0.0
    %523 = vmatpush1.msra.mxu0 0.0
    %524 = vmatprep.subr.mxu0 0.0
    %525 = vmatpush1.msra.mxu0 0.0
    %526 = vmatprep.subr.mxu0 0.0
    %527 = vmatpush1.msra.mxu0 0.0
    %528 = vmatprep.subr.mxu0 0.0
    %529 = vmatpush1.msra.mxu0 0.0
    %530 = vmatprep.subr.mxu0 0.0
    %531 = vmatpush1.msra.mxu0 0.0
    %532 = vmatprep.subr.mxu0 0.0
    %533 = vmatpush1.msra.mxu0 0.0
    %534 = vmatprep.subr.mxu0 0.0
    %535 = vmatpush1.msra.mxu0 0.0
    %536 = vmatprep.subr.mxu0 0.0
    %537 = vmatpush1.msra.mxu0 0.0
    %538 = vmatprep.subr.mxu0 0.0
    %539 = vmatpush1.msra.mxu0 0.0
    %540 = vmatprep.subr.mxu0 0.0
    %541 = vmatpush1.msra.mxu0 0.0
    %542 = vmatprep.subr.mxu0 0.0
    %543 = vmatpush1.msra.mxu0 %v350
    %544 = vmatprep.subr.mxu0 0.0
    %545 = vmatpush2.msra.mxu0 0.0
    %546 = vmatprep.subr.mxu0 0.0
    %547 = vmatpush2.msra.mxu0 0.0
    %548 = vmatprep.subr.mxu0 0.0
    %549 = vmatpush2.msra.mxu0 0.0
    %550 = vmatprep.subr.mxu0 0.0
    %551 = vmatpush2.msra.mxu0 0.0
    %552 = vmatprep.subr.mxu0 0.0
    %553 = vmatpush2.msra.mxu0 0.0
    %554 = vmatprep.subr.mxu0 0.0
    %555 = vmatpush2.msra.mxu0 0.0
    %556 = vmatprep.subr.mxu0 0.0
    %557 = vmatpush2.msra.mxu0 0.0
    %558 = vmatprep.subr.mxu0 0.0
    %559 = vmatpush2.msra.mxu0 0.0
    %560 = vmatprep.subr.mxu0 0.0
    %561 = vmatpush2.msra.mxu0 0.0
    %562 = vmatprep.subr.mxu0 0.0
    %563 = vmatpush2.msra.mxu0 0.0
    %564 = vmatprep.subr.mxu0 0.0
    %565 = vmatpush2.msra.mxu0 0.0
    %566 = vmatprep.subr.mxu0 0.0
    %567 = vmatpush2.msra.mxu0 0.0
    %568 = vmatprep.subr.mxu0 0.0
    %569 = vmatpush2.msra.mxu0 0.0
    %570 = vmatprep.subr.mxu0 0.0
    %571 = vmatpush2.msra.mxu0 0.0
    %572 = vmatprep.subr.mxu0 0.0
    %573 = vmatpush2.msra.mxu0 0.0
    %574 = vmatprep.subr.mxu0 0.0
    %575 = vmatpush2.msra.mxu0 0.0
    %576 = vmatprep.mubr.f32.mxu0 0.0
    %577 = vmatmul.mubr.f32.gmra.mxu0 %v510
    %v578 = vpop.f32.mrf.mxu0
    %v579 = vadd.f32 %v195, %v578
    %v580 = vpop.f32.mrf.mxu0
    %581 = vdwg.mxu0
    %v582 = vmax.f32 %v579, 0.0
    %v584 = vsel %vm423, %v582, 0
    %586 = vmatprep.subr.mxu0 0.0
    %587 = vmatpush1.msra.mxu0 0.0
    %588 = vmatprep.subr.mxu0 0.0
    %589 = vmatpush1.msra.mxu0 0.0
    %590 = vmatprep.subr.mxu0 0.0
    %591 = vmatpush1.msra.mxu0 0.0
    %592 = vmatprep.subr.mxu0 0.0
    %593 = vmatpush1.msra.mxu0 0.0
    %594 = vmatprep.subr.mxu0 0.0
    %595 = vmatpush1.msra.mxu0 0.0
    %596 = vmatprep.subr.mxu0 0.0
    %597 = vmatpush1.msra.mxu0 0.0
    %598 = vmatprep.subr.mxu0 0.0
    %599 = vmatpush1.msra.mxu0 0.0
    %600 = vmatprep.subr.mxu0 0.0
    %601 = vmatpush1.msra.mxu0 0.0
    %602 = vmatprep.subr.mxu0 0.0
    %603 = vmatpush1.msra.mxu0 0.0
    %604 = vmatprep.subr.mxu0 0.0
    %605 = vmatpush1.msra.mxu0 0.0
    %606 = vmatprep.subr.mxu0 0.0
    %607 = vmatpush1.msra.mxu0 0.0
    %608 = vmatprep.subr.mxu0 0.0
    %609 = vmatpush1.msra.mxu0 0.0
    %610 = vmatprep.subr.mxu0 0.0
    %611 = vmatpush1.msra.mxu0 %v36
    %612 = vmatprep.subr.mxu0 0.0
    %613 = vmatpush1.msra.mxu0 %v35
    %614 = vmatprep.subr.mxu0 0.0
    %615 = vmatpush1.msra.mxu0 %v34
    %616 = vmatprep.subr.mxu0 0.0
    %617 = vmatpush1.msra.mxu0 %v33
    %618 = vmatprep.subr.mxu0 0.0
    %619 = vmatpush2.msra.mxu0 0.0
    %620 = vmatprep.subr.mxu0 0.0
    %621 = vmatpush2.msra.mxu0 0.0
    %622 = vmatprep.subr.mxu0 0.0
    %623 = vmatpush2.msra.mxu0 0.0
    %624 = vmatprep.subr.mxu0 0.0
    %625 = vmatpush2.msra.mxu0 0.0
    %626 = vmatprep.subr.mxu0 0.0
    %627 = vmatpush2.msra.mxu0 0.0
    %628 = vmatprep.subr.mxu0 0.0
    %629 = vmatpush2.msra.mxu0 0.0
    %630 = vmatprep.subr.mxu0 0.0
    %631 = vmatpush2.msra.mxu0 0.0
    %632 = vmatprep.subr.mxu0 0.0
    %633 = vmatpush2.msra.mxu0 0.0
    %634 = vmatprep.subr.mxu0 0.0
    %635 = vmatpush2.msra.mxu0 0.0
    %636 = vmatprep.subr.mxu0 0.0
    %637 = vmatpush2.msra.mxu0 0.0
    %638 = vmatprep.subr.mxu0 0.0
    %639 = vmatpush2.msra.mxu0 0.0
    %640 = vmatprep.subr.mxu0 0.0
    %641 = vmatpush2.msra.mxu0 0.0
    %642 = vmatprep.subr.mxu0 0.0
    %643 = vmatpush2.msra.mxu0 0.0
    %644 = vmatprep.subr.mxu0 0.0
    %645 = vmatpush2.msra.mxu0 0.0
    %646 = vmatprep.subr.mxu0 0.0
    %647 = vmatpush2.msra.mxu0 0.0
    %648 = vmatprep.subr.mxu0 0.0
    %649 = vmatpush2.msra.mxu0 0.0
    %650 = vmatprep.mubr.f32.mxu0 0.0
    %651 = vmatmul.mubr.f32.gmra.mxu0 %v584
    %v652 = vpop.f32.mrf.mxu0
    %v653 = vadd.f32 0.0, %v652
    %v654 = vpop.f32.mrf.mxu0
    %655 = vdwg.mxu0
    %v656 = vadd.f32 %v504, %v653
    %v657 = vadd.f32 %v656, %v502
    %659 = vrot.lane.b32.xlu0 %v505, 125
    %v660 = vpop.permute.xlu0 %659
    %v662 = vsub.f32 %v657, %v660
    %v663 = vmul.f32 %v662, %v662
    %v664 = vmul.f32 %v663, 0.99
    %v665 = vadd.f32 %v508, %v664
    %v667 = vsel %vm46, %v657, 0
    %669 = vmatprep.subr.mxu0 0.0
    %670 = vmatpush1.msra.mxu0 0.0
    %671 = vmatprep.subr.mxu0 0.0
    %672 = vmatpush1.msra.mxu0 0.0
    %673 = vmatprep.subr.mxu0 0.0
    %674 = vmatpush1.msra.mxu0 0.0
    %675 = vmatprep.subr.mxu0 0.0
    %676 = vmatpush1.msra.mxu0 0.0
    %677 = vmatprep.subr.mxu0 0.0
    %678 = vmatpush1.msra.mxu0 0.0
    %679 = vmatprep.subr.mxu0 0.0
    %680 = vmatpush1.msra.mxu0 0.0
    %681 = vmatprep.subr.mxu0 0.0
    %682 = vmatpush1.msra.mxu0 0.0
    %683 = vmatprep.subr.mxu0 0.0
    %684 = vmatpush1.msra.mxu0 0.0
    %685 = vmatprep.subr.mxu0 0.0
    %686 = vmatpush1.msra.mxu0 0.0
    %687 = vmatprep.subr.mxu0 0.0
    %688 = vmatpush1.msra.mxu0 0.0
    %689 = vmatprep.subr.mxu0 0.0
    %690 = vmatpush1.msra.mxu0 0.0
    %691 = vmatprep.subr.mxu0 0.0
    %692 = vmatpush1.msra.mxu0 0.0
    %693 = vmatprep.subr.mxu0 0.0
    %694 = vmatpush1.msra.mxu0 0.0
    %695 = vmatprep.subr.mxu0 0.0
    %696 = vmatpush1.msra.mxu0 0.0
    %697 = vmatprep.subr.mxu0 0.0
    %698 = vmatpush1.msra.mxu0 0.0
    %699 = vmatprep.subr.mxu0 0.0
    %700 = vmatpush1.msra.mxu0 %v350
    %701 = vmatprep.subr.mxu0 0.0
    %702 = vmatpush2.msra.mxu0 0.0
    %703 = vmatprep.subr.mxu0 0.0
    %704 = vmatpush2.msra.mxu0 0.0
    %705 = vmatprep.subr.mxu0 0.0
    %706 = vmatpush2.msra.mxu0 0.0
    %707 = vmatprep.subr.mxu0 0.0
    %708 = vmatpush2.msra.mxu0 0.0
    %709 = vmatprep.subr.mxu0 0.0
    %710 = vmatpush2.msra.mxu0 0.0
    %711 = vmatprep.subr.mxu0 0.0
    %712 = vmatpush2.msra.mxu0 0.0
    %713 = vmatprep.subr.mxu0 0.0
    %714 = vmatpush2.msra.mxu0 0.0
    %715 = vmatprep.subr.mxu0 0.0
    %716 = vmatpush2.msra.mxu0 0.0
    %717 = vmatprep.subr.mxu0 0.0
    %718 = vmatpush2.msra.mxu0 0.0
    %719 = vmatprep.subr.mxu0 0.0
    %720 = vmatpush2.msra.mxu0 0.0
    %721 = vmatprep.subr.mxu0 0.0
    %722 = vmatpush2.msra.mxu0 0.0
    %723 = vmatprep.subr.mxu0 0.0
    %724 = vmatpush2.msra.mxu0 0.0
    %725 = vmatprep.subr.mxu0 0.0
    %726 = vmatpush2.msra.mxu0 0.0
    %727 = vmatprep.subr.mxu0 0.0
    %728 = vmatpush2.msra.mxu0 0.0
    %729 = vmatprep.subr.mxu0 0.0
    %730 = vmatpush2.msra.mxu0 0.0
    %731 = vmatprep.subr.mxu0 0.0
    %732 = vmatpush2.msra.mxu0 0.0
    %733 = vmatprep.mubr.f32.mxu0 0.0
    %734 = vmatmul.mubr.f32.gmra.mxu0 %v667
    %v735 = vpop.f32.mrf.mxu0
    %v736 = vadd.f32 %v269, %v735
    %v737 = vpop.f32.mrf.mxu0
    %738 = vdwg.mxu0
    %v739 = vmax.f32 %v736, 0.0
    %v741 = vsel %vm423, %v739, 0
    %743 = vmatprep.subr.mxu0 0.0
    %744 = vmatpush1.msra.mxu0 0.0
    %745 = vmatprep.subr.mxu0 0.0
    %746 = vmatpush1.msra.mxu0 0.0
    %747 = vmatprep.subr.mxu0 0.0
    %748 = vmatpush1.msra.mxu0 0.0
    %749 = vmatprep.subr.mxu0 0.0
    %750 = vmatpush1.msra.mxu0 0.0
    %751 = vmatprep.subr.mxu0 0.0
    %752 = vmatpush1.msra.mxu0 0.0
    %753 = vmatprep.subr.mxu0 0.0
    %754 = vmatpush1.msra.mxu0 0.0
    %755 = vmatprep.subr.mxu0 0.0
    %756 = vmatpush1.msra.mxu0 0.0
    %757 = vmatprep.subr.mxu0 0.0
    %758 = vmatpush1.msra.mxu0 0.0
    %759 = vmatprep.subr.mxu0 0.0
    %760 = vmatpush1.msra.mxu0 0.0
    %761 = vmatprep.subr.mxu0 0.0
    %762 = vmatpush1.msra.mxu0 0.0
    %763 = vmatprep.subr.mxu0 0.0
    %764 = vmatpush1.msra.mxu0 0.0
    %765 = vmatprep.subr.mxu0 0.0
    %766 = vmatpush1.msra.mxu0 0.0
    %767 = vmatprep.subr.mxu0 0.0
    %768 = vmatpush1.msra.mxu0 %v36
    %769 = vmatprep.subr.mxu0 0.0
    %770 = vmatpush1.msra.mxu0 %v35
    %771 = vmatprep.subr.mxu0 0.0
    %772 = vmatpush1.msra.mxu0 %v34
    %773 = vmatprep.subr.mxu0 0.0
    %774 = vmatpush1.msra.mxu0 %v33
    %775 = vmatprep.subr.mxu0 0.0
    %776 = vmatpush2.msra.mxu0 0.0
    %777 = vmatprep.subr.mxu0 0.0
    %778 = vmatpush2.msra.mxu0 0.0
    %779 = vmatprep.subr.mxu0 0.0
    %780 = vmatpush2.msra.mxu0 0.0
    %781 = vmatprep.subr.mxu0 0.0
    %782 = vmatpush2.msra.mxu0 0.0
    %783 = vmatprep.subr.mxu0 0.0
    %784 = vmatpush2.msra.mxu0 0.0
    %785 = vmatprep.subr.mxu0 0.0
    %786 = vmatpush2.msra.mxu0 0.0
    %787 = vmatprep.subr.mxu0 0.0
    %788 = vmatpush2.msra.mxu0 0.0
    %789 = vmatprep.subr.mxu0 0.0
    %790 = vmatpush2.msra.mxu0 0.0
    %791 = vmatprep.subr.mxu0 0.0
    %792 = vmatpush2.msra.mxu0 0.0
    %793 = vmatprep.subr.mxu0 0.0
    %794 = vmatpush2.msra.mxu0 0.0
    %795 = vmatprep.subr.mxu0 0.0
    %796 = vmatpush2.msra.mxu0 0.0
    %797 = vmatprep.subr.mxu0 0.0
    %798 = vmatpush2.msra.mxu0 0.0
    %799 = vmatprep.subr.mxu0 0.0
    %800 = vmatpush2.msra.mxu0 0.0
    %801 = vmatprep.subr.mxu0 0.0
    %802 = vmatpush2.msra.mxu0 0.0
    %803 = vmatprep.subr.mxu0 0.0
    %804 = vmatpush2.msra.mxu0 0.0
    %805 = vmatprep.subr.mxu0 0.0
    %806 = vmatpush2.msra.mxu0 0.0
    %807 = vmatprep.mubr.f32.mxu0 0.0
    %808 = vmatmul.mubr.f32.gmra.mxu0 %v741
    %v809 = vpop.f32.mrf.mxu0
    %v810 = vadd.f32 0.0, %v809
    %v811 = vpop.f32.mrf.mxu0
    %812 = vdwg.mxu0
    %v813 = vadd.f32 %v657, %v810
    %v814 = vadd.f32 %v813, %v502
    %815 = vrot.lane.b32.xlu0 %v505, 122
    %v816 = vpop.permute.xlu0 %815
    %v818 = vsub.f32 %v814, %v816
    %v819 = vmul.f32 %v818, %v818
    %v820 = vmul.f32 %v819, 0.9801
    %v821 = vadd.f32 %v665, %v820
    %v823 = vsel %vm46, %v814, 0
    %825 = vmatprep.subr.mxu0 0.0
    %826 = vmatpush1.msra.mxu0 0.0
    %827 = vmatprep.subr.mxu0 0.0
    %828 = vmatpush1.msra.mxu0 0.0
    %829 = vmatprep.subr.mxu0 0.0
    %830 = vmatpush1.msra.mxu0 0.0
    %831 = vmatprep.subr.mxu0 0.0
    %832 = vmatpush1.msra.mxu0 0.0
    %833 = vmatprep.subr.mxu0 0.0
    %834 = vmatpush1.msra.mxu0 0.0
    %835 = vmatprep.subr.mxu0 0.0
    %836 = vmatpush1.msra.mxu0 0.0
    %837 = vmatprep.subr.mxu0 0.0
    %838 = vmatpush1.msra.mxu0 0.0
    %839 = vmatprep.subr.mxu0 0.0
    %840 = vmatpush1.msra.mxu0 0.0
    %841 = vmatprep.subr.mxu0 0.0
    %842 = vmatpush1.msra.mxu0 0.0
    %843 = vmatprep.subr.mxu0 0.0
    %844 = vmatpush1.msra.mxu0 0.0
    %845 = vmatprep.subr.mxu0 0.0
    %846 = vmatpush1.msra.mxu0 0.0
    %847 = vmatprep.subr.mxu0 0.0
    %848 = vmatpush1.msra.mxu0 0.0
    %849 = vmatprep.subr.mxu0 0.0
    %850 = vmatpush1.msra.mxu0 0.0
    %851 = vmatprep.subr.mxu0 0.0
    %852 = vmatpush1.msra.mxu0 0.0
    %853 = vmatprep.subr.mxu0 0.0
    %854 = vmatpush1.msra.mxu0 0.0
    %855 = vmatprep.subr.mxu0 0.0
    %856 = vmatpush1.msra.mxu0 %v350
    %857 = vmatprep.subr.mxu0 0.0
    %858 = vmatpush2.msra.mxu0 0.0
    %859 = vmatprep.subr.mxu0 0.0
    %860 = vmatpush2.msra.mxu0 0.0
    %861 = vmatprep.subr.mxu0 0.0
    %862 = vmatpush2.msra.mxu0 0.0
    %863 = vmatprep.subr.mxu0 0.0
    %864 = vmatpush2.msra.mxu0 0.0
    %865 = vmatprep.subr.mxu0 0.0
    %866 = vmatpush2.msra.mxu0 0.0
    %867 = vmatprep.subr.mxu0 0.0
    %868 = vmatpush2.msra.mxu0 0.0
    %869 = vmatprep.subr.mxu0 0.0
    %870 = vmatpush2.msra.mxu0 0.0
    %871 = vmatprep.subr.mxu0 0.0
    %872 = vmatpush2.msra.mxu0 0.0
    %873 = vmatprep.subr.mxu0 0.0
    %874 = vmatpush2.msra.mxu0 0.0
    %875 = vmatprep.subr.mxu0 0.0
    %876 = vmatpush2.msra.mxu0 0.0
    %877 = vmatprep.subr.mxu0 0.0
    %878 = vmatpush2.msra.mxu0 0.0
    %879 = vmatprep.subr.mxu0 0.0
    %880 = vmatpush2.msra.mxu0 0.0
    %881 = vmatprep.subr.mxu0 0.0
    %882 = vmatpush2.msra.mxu0 0.0
    %883 = vmatprep.subr.mxu0 0.0
    %884 = vmatpush2.msra.mxu0 0.0
    %885 = vmatprep.subr.mxu0 0.0
    %886 = vmatpush2.msra.mxu0 0.0
    %887 = vmatprep.subr.mxu0 0.0
    %888 = vmatpush2.msra.mxu0 0.0
    %889 = vmatprep.mubr.f32.mxu0 0.0
    %890 = vmatmul.mubr.f32.gmra.mxu0 %v823
    %v891 = vpop.f32.mrf.mxu0
    %v892 = vadd.f32 %v343, %v891
    %v893 = vpop.f32.mrf.mxu0
    %894 = vdwg.mxu0
    %v895 = vmax.f32 %v892, 0.0
    %v897 = vsel %vm423, %v895, 0
    %899 = vmatprep.subr.mxu0 0.0
    %900 = vmatpush1.msra.mxu0 0.0
    %901 = vmatprep.subr.mxu0 0.0
    %902 = vmatpush1.msra.mxu0 0.0
    %903 = vmatprep.subr.mxu0 0.0
    %904 = vmatpush1.msra.mxu0 0.0
    %905 = vmatprep.subr.mxu0 0.0
    %906 = vmatpush1.msra.mxu0 0.0
    %907 = vmatprep.subr.mxu0 0.0
    %908 = vmatpush1.msra.mxu0 0.0
    %909 = vmatprep.subr.mxu0 0.0
    %910 = vmatpush1.msra.mxu0 0.0
    %911 = vmatprep.subr.mxu0 0.0
    %912 = vmatpush1.msra.mxu0 0.0
    %913 = vmatprep.subr.mxu0 0.0
    %914 = vmatpush1.msra.mxu0 0.0
    %915 = vmatprep.subr.mxu0 0.0
    %916 = vmatpush1.msra.mxu0 0.0
    %917 = vmatprep.subr.mxu0 0.0
    %918 = vmatpush1.msra.mxu0 0.0
    %919 = vmatprep.subr.mxu0 0.0
    %920 = vmatpush1.msra.mxu0 0.0
    %921 = vmatprep.subr.mxu0 0.0
    %922 = vmatpush1.msra.mxu0 0.0
    %923 = vmatprep.subr.mxu0 0.0
    %924 = vmatpush1.msra.mxu0 %v36
    %925 = vmatprep.subr.mxu0 0.0
    %926 = vmatpush1.msra.mxu0 %v35
    %927 = vmatprep.subr.mxu0 0.0
    %928 = vmatpush1.msra.mxu0 %v34
    %929 = vmatprep.subr.mxu0 0.0
    %930 = vmatpush1.msra.mxu0 %v33
    %931 = vmatprep.subr.mxu0 0.0
    %932 = vmatpush2.msra.mxu0 0.0
    %933 = vmatprep.subr.mxu0 0.0
    %934 = vmatpush2.msra.mxu0 0.0
    %935 = vmatprep.subr.mxu0 0.0
    %936 = vmatpush2.msra.mxu0 0.0
    %937 = vmatprep.subr.mxu0 0.0
    %938 = vmatpush2.msra.mxu0 0.0
    %939 = vmatprep.subr.mxu0 0.0
    %940 = vmatpush2.msra.mxu0 0.0
    %941 = vmatprep.subr.mxu0 0.0
    %942 = vmatpush2.msra.mxu0 0.0
    %943 = vmatprep.subr.mxu0 0.0
    %944 = vmatpush2.msra.mxu0 0.0
    %945 = vmatprep.subr.mxu0 0.0
    %946 = vmatpush2.msra.mxu0 0.0
    %947 = vmatprep.subr.mxu0 0.0
    %948 = vmatpush2.msra.mxu0 0.0
    %949 = vmatprep.subr.mxu0 0.0
    %950 = vmatpush2.msra.mxu0 0.0
    %951 = vmatprep.subr.mxu0 0.0
    %952 = vmatpush2.msra.mxu0 0.0
    %953 = vmatprep.subr.mxu0 0.0
    %954 = vmatpush2.msra.mxu0 0.0
    %955 = vmatprep.subr.mxu0 0.0
    %956 = vmatpush2.msra.mxu0 0.0
    %957 = vmatprep.subr.mxu0 0.0
    %958 = vmatpush2.msra.mxu0 0.0
    %959 = vmatprep.subr.mxu0 0.0
    %960 = vmatpush2.msra.mxu0 0.0
    %961 = vmatprep.subr.mxu0 0.0
    %962 = vmatpush2.msra.mxu0 0.0
    %963 = vmatprep.mubr.f32.mxu0 0.0
    %964 = vmatmul.mubr.f32.gmra.mxu0 %v897
    %v965 = vpop.f32.mrf.mxu0
    %v966 = vadd.f32 0.0, %v965
    %v967 = vpop.f32.mrf.mxu0
    %968 = vdwg.mxu0
    %v969 = vadd.f32 %v814, %v966
    %v970 = vadd.f32 %v969, %v502
    %971 = vrot.lane.b32.xlu0 %v505, 119
    %v972 = vpop.permute.xlu0 %971
    %v974 = vsub.f32 %v970, %v972
    %v975 = vmul.f32 %v974, %v974
    %v976 = vmul.f32 %v975, 0.970299
    %v977 = vadd.f32 %v821, %v976
    %v978 = vsel %vm46, %v977, 0.0
    %979 = vadd.xlane.f32.xlu0 %v978
    %v980 = vpop.xlane.xlu0 %979
    %v981 = vrot.slane %v980, 4
    %v982 = vadd.f32 %v980, %v981
    %v983 = vrot.slane %v982, 2
    %v984 = vadd.f32 %v982, %v983
    %v985 = vrot.slane %v984, 1
    %v986 = vadd.f32 %v984, %v985
    %s987 = vtos %v986
    %s988 = smul.f32 %s987, 0.041666668
    %v989 = vstv %s988
    %990 = vst [vmem:[#allocation2] sm:$0xff] %v989
    // Predicated region
    $region34: #{tpu_custom_call.1} parent=1 // pred_check
      _
    $region35: #{tpu_custom_call.1} parent=1 // pred_check_branch
      %992 = sbr.rel (0) target = $region37
    $region36: #{tpu_custom_call.1} parent=1 // pred_region
      %s994 = ssub.s32 128, 128
      %995 = vsyncadd [#allocation3], %s994
      %s997 = sshll.u32 [#allocation2], 4
      %s998 = int_to_ptr.vmem [resolvable:$true] %s997
      %1000 = dma.vmem_to_hbm [thread:$0]  %s998, 128, %s8, [#allocation3]
    $region37: #{tpu_custom_call.1} parent=1 // pred_fallthru
      _
    // Predicated region
    $region38: #{tpu_custom_call.1} parent=1 // pred_check
      _
    $region39: #{tpu_custom_call.1} parent=1 // pred_check_branch
      %1002 = sbr.rel (0) target = $region41
    $region40: #{tpu_custom_call.1} parent=1 // pred_region
      %1003 = dma.done [#allocation3], 128
    $region41: #{tpu_custom_call.1} parent=1 // pred_fallthru
      _
    %1004 = vsyncpa [#allocation3], 1

</llo_original>
